<compile_context>
chip_gen: v7x
topology: tpu7x:2x2x1
jax: 0.10.0
libtpu: 0.0.40
codegen_flags: <defaults>
</compile_context>

<pallas_src>
import jax
import jax.numpy as jnp
from jax.experimental import pallas as pl
from jax.experimental.pallas import tpu as pltpu


# ---------------------------------------------------------------------------
# Fast path: output written directly in final row-major (N, K) layout, viewed
# as (N/rep, 128) with rep = 128 // K.
# ---------------------------------------------------------------------------
def _tri_kernel_flat(x_ref, e_ref, c_ref, iw_ref, o_ref):
    # x_ref : (TM, rep)  VMEM  -- rows of rep consecutive flattened-x values
    # e_ref : (rep, 128) VMEM  -- resident 0/1 lane-expansion matrix, E[j,c]=(c//K==j)
    # c_ref : (1, 128)   VMEM  -- resident centroids tiled rep times (col c -> centroid c%K)
    # iw_ref: (1, 128)   VMEM  -- resident 1/widths tiled the same way
    # o_ref : (TM, 128)  VMEM  -- lane-dense output block (= rows of the (N,K) output)
    x_rep = jnp.dot(x_ref[...], e_ref[...], preferred_element_type=jnp.float32)
    diff = jnp.abs(c_ref[...] - x_rep)
    o_ref[...] = jnp.maximum(1.0 - diff * iw_ref[...], 0.0).astype(o_ref.dtype)


def _choose_row_tile(n_rows, rep, target_out_bytes=8 << 20, min_steps=4,
                     vmem_budget=24 << 20):
    """Sublane tile TM for the (n_rows, 128) output: multiple of 8 (or full dim),
    ~8 MiB output blocks, capped so double-buffered in+out fits the VMEM budget,
    and >= min_steps grid steps when the problem is big enough (v7x: 2 TCs, each
    needs >= 2 blocks to overlap DMA with compute)."""
    tm = max(8, (target_out_bytes // (128 * 4)) // 8 * 8)
    cap = (vmem_budget // (2 * (rep + 128) * 4)) // 8 * 8
    tm = min(tm, max(8, cap))
    if n_rows >= min_steps * 8:
        per_step = max(8, (pl.cdiv(n_rows, min_steps) // 8) * 8)
        tm = min(tm, per_step)
    if tm >= n_rows:
        return int(n_rows)  # single full block (legal even if n_rows % 8 != 0)
    return int(tm)


# ---------------------------------------------------------------------------
# Fallback path (128 % K != 0): lane-dense transposed (K, N) output + XLA
# transpose.  Never emits masked 8-lane stores.
# ---------------------------------------------------------------------------
def _tri_kernel_transposed(x_ref, c_ref, iw_ref, o_ref):
    # x_ref: (1, TN), c_ref: (K, 1), iw_ref: (K, 1), o_ref: (K, TN)
    diff = jnp.abs(c_ref[...] - x_ref[...])
    o_ref[...] = jnp.maximum(1.0 - diff * iw_ref[...], 0.0).astype(o_ref.dtype)


def _choose_lane_tile(n, k, target_out_bytes=4 << 20, min_steps=4):
    if n <= 128:
        return int(n)
    tn = max(128, (target_out_bytes // (k * 4)) // 128 * 128)
    if n >= min_steps * 128:
        per_step = max(128, (pl.cdiv(n, min_steps) // 128) * 128)
        tn = min(tn, per_step)
    if tn >= n:
        return int(n)
    return int(tn)


# ---------------------------------------------------------------------------
# Wrapper
# ---------------------------------------------------------------------------
def triangular_kernel(x, centroids, widths=1.0):
    """x: any shape; centroids: (K,); widths: scalar or (K,) -> (*x.shape, K) f32."""
    shape = x.shape
    k = int(centroids.shape[0])
    cf = jnp.asarray(centroids, jnp.float32).reshape(-1)
    w = jnp.asarray(widths, jnp.float32)
    iw_k = (1.0 / jnp.broadcast_to(w, (k,))).astype(jnp.float32)  # scalar or per-centroid

    xf = jnp.asarray(x, jnp.float32).reshape(-1)
    n = int(xf.size)

    if 128 % k == 0:
        # ---- fast path: final (N, K) row-major layout as a (N/rep, 128) slab ----
        rep = 128 // k
        n_pad = pl.cdiv(n, rep) * rep
        padded = n_pad != n
        if padded:
            xf = jnp.pad(xf, (0, n_pad - n))  # cheap: input side only
        r = n_pad // rep
        x2 = xf.reshape(r, rep)

        c_row = jnp.tile(cf, rep).reshape(1, 128)       # col c -> centroid[c % K]
        iw_row = jnp.tile(iw_k, rep).reshape(1, 128)
        # E[j, c] = 1 iff c // K == j  => (x2 @ E)[m, c] = x2[m, c // K]
        e = (jnp.arange(128)[None, :] // k == jnp.arange(rep)[:, None]).astype(jnp.float32)

        tm = _choose_row_tile(r, rep)
        grid = (pl.cdiv(r, tm),)

        needed = 2 * tm * (rep + 128) * 4 + (rep * 128 + 2 * 128) * 4
        vmem_limit = int(min(max(needed + (4 << 20), 16 << 20), 32 << 20))

        out2d = pl.pallas_call(
            _tri_kernel_flat,
            out_shape=jax.ShapeDtypeStruct((r, 128), jnp.float32),
            grid=grid,
            in_specs=[
                pl.BlockSpec((tm, rep), lambda i: (i, 0)),   # x rows
                pl.BlockSpec((rep, 128), lambda i: (0, 0)),  # expansion matrix (resident)
                pl.BlockSpec((1, 128), lambda i: (0, 0)),    # tiled centroids (resident)
                pl.BlockSpec((1, 128), lambda i: (0, 0)),    # tiled 1/widths  (resident)
            ],
            out_specs=pl.BlockSpec((tm, 128), lambda i: (i, 0)),  # lane-dense stores
            compiler_params=pltpu.CompilerParams(
                dimension_semantics=("parallel",),
                vmem_limit_bytes=vmem_limit,
            ),
        )(x2, e, c_row, iw_row)

        out_flat = out2d.reshape(-1)          # free: row-major reshape
        if padded:
            out_flat = out_flat[: n * k]      # only when N % rep != 0 (extra copy)
        return out_flat.reshape(*shape, k)

    # ---- fallback: (K, N) lane-dense kernel + XLA transpose ----
    xf2 = xf.reshape(1, -1)
    c2 = cf.reshape(k, 1)
    iw2 = iw_k.reshape(k, 1)
    tn = _choose_lane_tile(n, k)
    grid = (pl.cdiv(n, tn),)
    needed = 2 * tn * (k + 1) * 4 + 2 * k * 4
    vmem_limit = int(min(max(needed + (4 << 20), 16 << 20), 32 << 20))

    out_t = pl.pallas_call(
        _tri_kernel_transposed,
        out_shape=jax.ShapeDtypeStruct((k, n), jnp.float32),
        grid=grid,
        in_specs=[
            pl.BlockSpec((1, tn), lambda i: (0, i)),
            pl.BlockSpec((k, 1), lambda i: (0, 0)),
            pl.BlockSpec((k, 1), lambda i: (0, 0)),
        ],
        out_specs=pl.BlockSpec((k, tn), lambda i: (0, i)),
        compiler_params=pltpu.CompilerParams(
            dimension_semantics=("parallel",),
            vmem_limit_bytes=vmem_limit,
        ),
    )(xf2, c2, iw2)
    return out_t.T.reshape(*shape, k)


def triangular_kernel_ref(x, centroids, widths):
    # pure-JAX reference mirroring the PyTorch forward
    c = centroids.reshape(*([1] * x.ndim), -1)
    return jnp.maximum(1.0 - jnp.abs(c - x[..., None]) / widths, 0.0)


if __name__ == "__main__":
    key = jax.random.PRNGKey(0)

    B, D, K = 2, 32, 8
    x = jax.random.normal(key, (B, D), dtype=jnp.float32)
    centroids = jnp.linspace(-1.0, 1.0, K, dtype=jnp.float32)   # buffer (K,)
    widths = jnp.float32(1.0)                                   # default widths = tensor(1)

    out = triangular_kernel(x, centroids, widths)
    jax.block_until_ready(out)
    ref = triangular_kernel_ref(x, centroids, widths)
    assert out.shape == (B, D, K)
    assert jnp.allclose(out, ref, atol=1e-5), "mismatch vs reference (scalar widths)"

    # per-centroid widths (shape (K,)) — previously unsupported correctness concern
    widths_k = jnp.linspace(0.5, 2.0, K, dtype=jnp.float32)
    out2 = triangular_kernel(x, centroids, widths_k)
    jax.block_until_ready(out2)
    ref2 = triangular_kernel_ref(x, centroids, widths_k)
    assert jnp.allclose(out2, ref2, atol=1e-5), "mismatch vs reference (per-centroid widths)"

    print("KERNEL_OK")
</pallas_src>

<mosaic_0001>
module attributes {stable_mosaic.version = 11 : i64} {
  func.func @_tri_kernel_flat(%arg0: i32, %arg1: memref<4x16xf32, #tpu.memory_space<vmem>>, %arg2: memref<16x128xf32, #tpu.memory_space<vmem>>, %arg3: memref<1x128xf32, #tpu.memory_space<vmem>>, %arg4: memref<1x128xf32, #tpu.memory_space<vmem>>, %arg5: memref<4x128xf32, #tpu.memory_space<vmem>>) attributes {dimension_semantics = [#tpu.dimension_semantics<parallel>], iteration_bounds = array<i64: 1>, scalar_prefetch = 0 : i64, scratch_operands = 0 : i64, tpu.core_type = #tpu.core_type<tc>, window_params = [{transform_indices = @transform_0, window_bounds = array<i64: 4, 16>}, {pipeline_mode = #tpu.pipeline_mode<synchronous>, transform_indices = @transform_1, window_bounds = array<i64: 16, 128>}, {pipeline_mode = #tpu.pipeline_mode<synchronous>, transform_indices = @transform_2, window_bounds = array<i64: 1, 128>}, {pipeline_mode = #tpu.pipeline_mode<synchronous>, transform_indices = @transform_3, window_bounds = array<i64: 1, 128>}, {transform_indices = @transform_4, window_bounds = array<i64: 4, 128>}]} {
    %c0 = arith.constant 0 : index
    %c0_0 = arith.constant 0 : index
    %0 = vector.load %arg1[%c0, %c0_0] : memref<4x16xf32, #tpu.memory_space<vmem>>, vector<4x16xf32>
    %c0_1 = arith.constant 0 : index
    %c0_2 = arith.constant 0 : index
    %1 = vector.load %arg2[%c0_1, %c0_2] : memref<16x128xf32, #tpu.memory_space<vmem>>, vector<16x128xf32>
    %cst = arith.constant dense<0.000000e+00> : vector<4x128xf32>
    %2 = tpu.matmul %0, %1, %cst {dimension_numbers = #tpu.dot_dimension_numbers<[1], [0], [0], [1], [0, 0, 1, 1], [], []>} : vector<4x16xf32>, vector<16x128xf32>, vector<4x128xf32> -> vector<4x128xf32>
    %c0_3 = arith.constant 0 : index
    %c0_4 = arith.constant 0 : index
    %3 = vector.load %arg3[%c0_3, %c0_4] : memref<1x128xf32, #tpu.memory_space<vmem>>, vector<1x128xf32>
    %4 = vector.broadcast %3 : vector<1x128xf32> to vector<4x128xf32>
    %5 = arith.subf %4, %2 : vector<4x128xf32>
    %6 = math.absf %5 : vector<4x128xf32>
    %c0_5 = arith.constant 0 : index
    %c0_6 = arith.constant 0 : index
    %7 = vector.load %arg4[%c0_5, %c0_6] : memref<1x128xf32, #tpu.memory_space<vmem>>, vector<1x128xf32>
    %8 = vector.broadcast %7 : vector<1x128xf32> to vector<4x128xf32>
    %9 = arith.mulf %6, %8 : vector<4x128xf32>
    %cst_7 = arith.constant 1.000000e+00 : f32
    %10 = vector.broadcast %cst_7 : f32 to vector<4x128xf32>
    %11 = arith.subf %10, %9 : vector<4x128xf32>
    %cst_8 = arith.constant 0.000000e+00 : f32
    %12 = vector.broadcast %cst_8 : f32 to vector<4x128xf32>
    %13 = arith.maximumf %11, %12 : vector<4x128xf32>
    %c0_9 = arith.constant 0 : index
    %c0_10 = arith.constant 0 : index
    %14 = vector.load %arg5[%c0_9, %c0_10] : memref<4x128xf32, #tpu.memory_space<vmem>>, vector<4x128xf32>
    tpu.vector_store %arg5[%c0_9, %c0_10], %13 {strides = array<i32>} : memref<4x128xf32, #tpu.memory_space<vmem>>, vector<4x128xf32>,
    return
  }
  func.func @transform_0(%arg0: i32) -> (i32, i32) {
    %c0_i32 = arith.constant 0 : i32
    %c0_i32_0 = arith.constant 0 : i32
    return %arg0, %c0_i32 : i32, i32
  }
  func.func @transform_1(%arg0: i32) -> (i32, i32) {
    %c0_i32 = arith.constant 0 : i32
    %c0_i32_0 = arith.constant 0 : i32
    %c0_i32_1 = arith.constant 0 : i32
    return %c0_i32, %c0_i32_0 : i32, i32
  }
  func.func @transform_2(%arg0: i32) -> (i32, i32) {
    %c0_i32 = arith.constant 0 : i32
    %c0_i32_0 = arith.constant 0 : i32
    %c0_i32_1 = arith.constant 0 : i32
    return %c0_i32, %c0_i32_0 : i32, i32
  }
  func.func @transform_3(%arg0: i32) -> (i32, i32) {
    %c0_i32 = arith.constant 0 : i32
    %c0_i32_0 = arith.constant 0 : i32
    %c0_i32_1 = arith.constant 0 : i32
    return %c0_i32, %c0_i32_0 : i32, i32
  }
  func.func @transform_4(%arg0: i32) -> (i32, i32) {
    %c0_i32 = arith.constant 0 : i32
    %c0_i32_0 = arith.constant 0 : i32
    return %arg0, %c0_i32 : i32, i32
  }
}

</mosaic_0001>

<llo_original>
// kernel: tpu_custom_call.1
$region0: #{tpu_custom_call.1}
  #allocation0 [shape = 'u32[]', space=smem, size = 0x4, offset = 0x4, fixed_abs, tag = 'smem constant byte address 0x4 - core index']
  #allocation1 [shape = 'u32[144,128]{1,0:T(1,128)}', space=vmem, size = 0x12000, scoped, tag = 'internal scratch']
  %s0 = inlined_call_operand.hbm [shape: f32[4,16], index: 0, kind: input, shape index: {}]
  %s1 = inlined_call_operand.hbm [shape: f32[16,128], index: 1, kind: input, shape index: {}]
  %s2 = inlined_call_operand.vmem [shape: f32[1,128], index: 2, kind: input, shape index: {}]
  %s3 = inlined_call_operand.vmem [shape: f32[1,128], index: 3, kind: input, shape index: {}]
  %s4 = inlined_call_operand.hbm [shape: f32[4,128], index: 4, kind: output, shape index: {}]
  %s5 = sld [smem:[#allocation0]]
  $region34: #{tpu_custom_call.1} parent=0
    _
  %s7 = ssub.s32 1, %s5
  %s8 = scalar_select 0, %s7, %s5
  $region1: #{tpu_custom_call.1} parent=0
    #allocation2 [shape = 'u8[2048]{0}', space=vmem, size = 0x800, scoped, tag = 'input window, operand 0, single buffered']
    #allocation3 [shape = 's32[1]{0}', space=sflag, size = 0x4, scoped, tag = 'scoped memory for tpu_custom_call.1']
    #allocation4 [shape = 's32[1]{0}', space=sflag, size = 0x4, scoped, tag = 'scoped memory for tpu_custom_call.1']
    #allocation5 [shape = 'u8[8192]{0}', space=vmem, size = 0x2000, scoped, tag = 'input window, operand 1, single buffered']
    #allocation6 [shape = 's32[1]{0}', space=sflag, size = 0x4, scoped, tag = 'scoped memory for tpu_custom_call.1']
    #allocation7 [shape = 'u8[2048]{0}', space=vmem, size = 0x800, scoped, tag = 'output window, operand 0, single buffered']
    %9 = vsyncpa [#allocation3], 0
    %10 = vsyncpa [#allocation6], 0
    %11 = vsyncpa [#allocation4], 0
    // Predicated region
    $region2: #{tpu_custom_call.1} parent=1 // pred_check
      _
    $region3: #{tpu_custom_call.1} parent=1 // pred_check_branch
      %13 = sbr.rel (0) target = $region5
    $region4: #{tpu_custom_call.1} parent=1 // pred_region
      %s15 = ssub.s32 64, 64
      %16 = vsyncadd [#allocation3], %s15
      %s18 = sshll.u32 [#allocation2], 4
      %s19 = int_to_ptr.vmem [resolvable:$true] %s18
      %21 = dma.hbm_to_vmem [thread:$0]  %s0, 64, %s19, [#allocation3]
    $region5: #{tpu_custom_call.1} parent=1 // pred_fallthru
      _
    // Predicated region
    $region6: #{tpu_custom_call.1} parent=1 // pred_check
      _
    $region7: #{tpu_custom_call.1} parent=1 // pred_check_branch
      %23 = sbr.rel (0) target = $region9
    $region8: #{tpu_custom_call.1} parent=1 // pred_region
      %s25 = ssub.s32 256, 256
      %26 = vsyncadd [#allocation6], %s25
      %s27 = sshll.u32 [#allocation5], 4
      %s28 = int_to_ptr.vmem [resolvable:$true] %s27
      %33 = dma.hbm_to_vmem [thread:$0]  %s1, 256, %s28, [#allocation6], 128, 128, 8
    $region9: #{tpu_custom_call.1} parent=1 // pred_fallthru
      _
    // Predicated region
    $region10: #{tpu_custom_call.1} parent=1 // pred_check
      _
    $region11: #{tpu_custom_call.1} parent=1 // pred_check_branch
      %35 = sbr.rel (0) target = $region13
    $region12: #{tpu_custom_call.1} parent=1 // pred_region
      _
    $region13: #{tpu_custom_call.1} parent=1 // pred_fallthru
      _
    // Predicated region
    $region14: #{tpu_custom_call.1} parent=1 // pred_check
      _
    $region15: #{tpu_custom_call.1} parent=1 // pred_check_branch
      %37 = sbr.rel (0) target = $region17
    $region16: #{tpu_custom_call.1} parent=1 // pred_region
      _
    $region17: #{tpu_custom_call.1} parent=1 // pred_fallthru
      _
    // Predicated region
    $region18: #{tpu_custom_call.1} parent=1 // pred_check
      _
    $region19: #{tpu_custom_call.1} parent=1 // pred_check_branch
      %39 = sbr.rel (0) target = $region21
    $region20: #{tpu_custom_call.1} parent=1 // pred_region
      %40 = dma.done [#allocation3], 64
    $region21: #{tpu_custom_call.1} parent=1 // pred_fallthru
      _
    // Predicated region
    $region22: #{tpu_custom_call.1} parent=1 // pred_check
      _
    $region23: #{tpu_custom_call.1} parent=1 // pred_check_branch
      %42 = sbr.rel (0) target = $region25
    $region24: #{tpu_custom_call.1} parent=1 // pred_region
      %43 = dma.done [#allocation6], 256
    $region25: #{tpu_custom_call.1} parent=1 // pred_fallthru
      _
    %v44 = vld [vmem:[#allocation2] sm:$0xf]
    %v45 = vld [vmem:[#allocation5] sm:$0xff]
    %v46 = vld [vmem:[#allocation5 + $0x8] sm:$0xff]
    %vm47 = vcmask 130048
    %v49 = vsel %vm47, %v44, 0
    %51 = vmatprep.subr.mxu0 0.0
    %52 = vmatpush1.msra.mxu0 %v45
    %53 = vmatprep.subr.mxu0 0.0
    %54 = vmatpush1.msra.mxu0 %v46
    %55 = vmatprep.subr.mxu0 0.0
    %56 = vmatpush1.msra.mxu0 0.0
    %57 = vmatprep.subr.mxu0 0.0
    %58 = vmatpush1.msra.mxu0 0.0
    %59 = vmatprep.subr.mxu0 0.0
    %60 = vmatpush1.msra.mxu0 0.0
    %61 = vmatprep.subr.mxu0 0.0
    %62 = vmatpush1.msra.mxu0 0.0
    %63 = vmatprep.subr.mxu0 0.0
    %64 = vmatpush1.msra.mxu0 0.0
    %65 = vmatprep.subr.mxu0 0.0
    %66 = vmatpush1.msra.mxu0 0.0
    %67 = vmatprep.subr.mxu0 0.0
    %68 = vmatpush1.msra.mxu0 0.0
    %69 = vmatprep.subr.mxu0 0.0
    %70 = vmatpush1.msra.mxu0 0.0
    %71 = vmatprep.subr.mxu0 0.0
    %72 = vmatpush1.msra.mxu0 0.0
    %73 = vmatprep.subr.mxu0 0.0
    %74 = vmatpush1.msra.mxu0 0.0
    %75 = vmatprep.subr.mxu0 0.0
    %76 = vmatpush1.msra.mxu0 0.0
    %77 = vmatprep.subr.mxu0 0.0
    %78 = vmatpush1.msra.mxu0 0.0
    %79 = vmatprep.subr.mxu0 0.0
    %80 = vmatpush1.msra.mxu0 0.0
    %81 = vmatprep.subr.mxu0 0.0
    %82 = vmatpush1.msra.mxu0 0.0
    %83 = vmatprep.subr.mxu0 0.0
    %84 = vmatpush1.msra.mxu0 0.0
    %85 = vmatprep.subr.mxu0 0.0
    %86 = vmatpush1.msra.mxu0 0.0
    %87 = vmatprep.subr.mxu0 0.0
    %88 = vmatpush1.msra.mxu0 0.0
    %89 = vmatprep.subr.mxu0 0.0
    %90 = vmatpush1.msra.mxu0 0.0
    %91 = vmatprep.subr.mxu0 0.0
    %92 = vmatpush1.msra.mxu0 0.0
    %93 = vmatprep.subr.mxu0 0.0
    %94 = vmatpush1.msra.mxu0 0.0
    %95 = vmatprep.subr.mxu0 0.0
    %96 = vmatpush1.msra.mxu0 0.0
    %97 = vmatprep.subr.mxu0 0.0
    %98 = vmatpush1.msra.mxu0 0.0
    %99 = vmatprep.subr.mxu0 0.0
    %100 = vmatpush1.msra.mxu0 0.0
    %101 = vmatprep.subr.mxu0 0.0
    %102 = vmatpush1.msra.mxu0 0.0
    %103 = vmatprep.subr.mxu0 0.0
    %104 = vmatpush1.msra.mxu0 0.0
    %105 = vmatprep.subr.mxu0 0.0
    %106 = vmatpush1.msra.mxu0 0.0
    %107 = vmatprep.subr.mxu0 0.0
    %108 = vmatpush1.msra.mxu0 0.0
    %109 = vmatprep.subr.mxu0 0.0
    %110 = vmatpush1.msra.mxu0 0.0
    %111 = vmatprep.subr.mxu0 0.0
    %112 = vmatpush1.msra.mxu0 0.0
    %113 = vmatprep.subr.mxu0 0.0
    %114 = vmatpush1.msra.mxu0 0.0
    %115 = vmatprep.mubr.f32.mxu0 0.0
    %116 = vmatmul.mubr.f32.gmra.mrb[0].mxu0 %v49
    %v117 = vpop.f32.mrb[0].mxu0
    %v118 = vadd.f32 0.0, %v117
    %v119 = vpop.f32.mrb[0].mxu0
    %120 = vdwg.mxu0
    %v121 = vld [vmem:[%s2] sm:$0x1]
    %v123 = vlaneseq
    %v124 = vshrl.u32 %v123, 7
    %v125 = vsub.s32 0, %v124
    %v126 = vrot.slane %v121, %v125
    %v128 = vsub.f32 %v126, %v118
    %v129 = vand.u32 2147483647, %v128
    %v130 = vld [vmem:[%s3] sm:$0x1]
    %v132 = vlaneseq
    %v133 = vshrl.u32 %v132, 7
    %v134 = vsub.s32 0, %v133
    %v135 = vrot.slane %v130, %v134
    %v137 = vmul.f32 %v129, %v135
    %v138 = vsub.f32 1.0, %v137
    %v139 = vmax.f32 %v138, 0.0
    %140 = vst [vmem:[#allocation7] sm:$0xf] %v139
    // Predicated region
    $region26: #{tpu_custom_call.1} parent=1 // pred_check
      _
    $region27: #{tpu_custom_call.1} parent=1 // pred_check_branch
      %142 = sbr.rel (0) target = $region29
    $region28: #{tpu_custom_call.1} parent=1 // pred_region
      %s144 = ssub.s32 64, 64
      %145 = vsyncadd [#allocation4], %s144
      %s147 = sshll.u32 [#allocation7], 4
      %s148 = int_to_ptr.vmem [resolvable:$true] %s147
      %150 = dma.vmem_to_hbm [thread:$0]  %s148, 64, %s4, [#allocation4]
    $region29: #{tpu_custom_call.1} parent=1 // pred_fallthru
      _
    // Predicated region
    $region30: #{tpu_custom_call.1} parent=1 // pred_check
      _
    $region31: #{tpu_custom_call.1} parent=1 // pred_check_branch
      %152 = sbr.rel (0) target = $region33
    $region32: #{tpu_custom_call.1} parent=1 // pred_region
      %153 = dma.done [#allocation4], 64
    $region33: #{tpu_custom_call.1} parent=1 // pred_fallthru
      _
    %154 = vsyncpa [#allocation3], 1
    %155 = vsyncpa [#allocation6], 1
    %156 = vsyncpa [#allocation4], 1

</llo_original>
